<compile_context>
chip_gen: v7x
topology: tpu7x:2x2x1
jax: 0.10.0
libtpu: 0.0.40
codegen_flags: <defaults>
</compile_context>

<pallas_src>
import jax
import jax.numpy as jnp
from jax.experimental import pallas as pl
from jax.experimental.pallas import tpu as pltpu


# --------------------------------------------------------------------------- #
# Kernel
# --------------------------------------------------------------------------- #
def _decoder_kernel(z_ref, c_ref,
                    w1z_ref, w1c_ref, b1_ref,
                    w2_ref, b2_ref,
                    w3_ref, b3_ref,
                    o_ref):
    z = z_ref[...]                                   # [TB, E]  f32
    c = c_ref[...]                                   # [TB, 1]  f32

    # --- layer 1: (Linear + folded BN); concat replaced by rank-1 FMA ---
    h1 = jnp.dot(z, w1z_ref[...], preferred_element_type=jnp.float32)
    h1 = h1 + c * w1c_ref[...] + b1_ref[...]         # [TB,1]*[1,H2] broadcast FMA
    h1 = jnp.maximum(h1, 0.0)                        # Dropout(eval)=id, ReLU

    # --- layer 2: (Linear + folded BN) -> ReLU ---
    h2 = jnp.dot(h1, w2_ref[...], preferred_element_type=jnp.float32) + b2_ref[...]
    h2 = jnp.maximum(h2, 0.0)

    # --- layer 3: Linear -> Sigmoid (EUP exp; free slot vs MXU/VPU) ---
    h3 = jnp.dot(h2, w3_ref[...], preferred_element_type=jnp.float32) + b3_ref[...]
    o_ref[...] = jax.nn.sigmoid(h3).astype(o_ref.dtype)


# --------------------------------------------------------------------------- #
# One-time parameter preparation (hoisted out of the per-call path)
# --------------------------------------------------------------------------- #
def prepare_params(params, encoded_size, eps=1e-5):
    """Fold BatchNorm1d (running stats) + Linear bias into the weights and
    split w1 into its z-part and c-part.  Call ONCE at model-load time."""
    (w1, b1, g1, be1, m1, v1,
     w2, b2, g2, be2, m2, v2,
     w3, b3) = params

    s1 = g1 / jnp.sqrt(v1 + eps)
    t1 = be1 - m1 * s1
    s2 = g2 / jnp.sqrt(v2 + eps)
    t2 = be2 - m2 * s2

    w1f = w1 * s1[None, :]                           # [E+1, H2]
    b1f = (b1 * s1 + t1).reshape(1, -1)              # [1, H2]
    w2f = w2 * s2[None, :]                           # [H2, H1]
    b2f = (b2 * s2 + t2).reshape(1, -1)              # [1, H1]
    b3f = b3.reshape(1, -1)                          # [1, OUT]

    w1z = w1f[:encoded_size, :]                      # [E, H2]
    w1c = w1f[encoded_size:encoded_size + 1, :]      # [1, H2]

    return (w1z, w1c, b1f, w2f, b2f, w3, b3f)


# --------------------------------------------------------------------------- #
# Forward wrapper: exactly one pallas_call per invocation
# --------------------------------------------------------------------------- #
def nn_decoder_forward(z, c, folded_params, *, block_batch=512):
    """z: [B, encoded_size], c: [B, 1] -> x_cf: [B, data_size-1]."""
    z = z.astype(jnp.float32)
    c = c.astype(jnp.float32)
    B, E = z.shape

    w1z, w1c, b1, w2, b2, w3, b3 = folded_params
    out_dim = w3.shape[1]

    # Batch tile: whole batch if small / non-divisible, otherwise a multiple-of-8
    # tile so the grid pipelines activation DMA against MXU compute.
    if B <= block_batch or (B % block_batch) != 0 or (block_batch % 8) != 0:
        tb = B
    else:
        tb = block_batch
    grid = (B // tb,)

    def rows(feat):              # batch-tiled activations / output
        return pl.BlockSpec((tb, feat), lambda i: (i, 0))

    def pinned(arr):             # weights/biases: same block every step -> VMEM-resident
        return pl.BlockSpec(arr.shape, lambda i: (0, 0))

    return pl.pallas_call(
        _decoder_kernel,
        out_shape=jax.ShapeDtypeStruct((B, out_dim), jnp.float32),
        grid=grid,
        in_specs=[
            rows(E),             # z
            rows(1),             # c
            pinned(w1z), pinned(w1c), pinned(b1),
            pinned(w2), pinned(b2),
            pinned(w3), pinned(b3),
        ],
        out_specs=rows(out_dim),
        compiler_params=pltpu.CompilerParams(
            dimension_semantics=("parallel",)),   # megacore sharding on v7x
    )(z, c, w1z, w1c, b1, w2, b2, w3, b3)


# --------------------------------------------------------------------------- #
# Pure-JAX reference (unfused, unfolded) for correctness check
# --------------------------------------------------------------------------- #
def _reference_forward(z, c, params):
    x = jnp.concatenate([z, c], axis=1).astype(jnp.float32)
    (w1, b1, g1, be1, m1, v1,
     w2, b2, g2, be2, m2, v2,
     w3, b3) = params
    eps = 1e-5
    h = x @ w1 + b1
    h = (h - m1) / jnp.sqrt(v1 + eps) * g1 + be1
    h = jnp.maximum(h, 0.0)
    h = h @ w2 + b2
    h = (h - m2) / jnp.sqrt(v2 + eps) * g2 + be2
    h = jnp.maximum(h, 0.0)
    h = h @ w3 + b3
    return jax.nn.sigmoid(h)


def _init_params(key, encoded_size, hidden2, hidden1, data_size):
    """Deterministic synthetic params.  Linear weights stored as [in, out]
    (transpose of torch's [out, in]); math is identical."""
    in1 = encoded_size + 1
    out3 = data_size - 1
    ks = jax.random.split(key, 8)

    def lin(k, fan_in, fan_out):
        kw, kb = jax.random.split(k)
        bound = 1.0 / jnp.sqrt(fan_in)
        w = jax.random.uniform(kw, (fan_in, fan_out), jnp.float32, -bound, bound)
        b = jax.random.uniform(kb, (fan_out,), jnp.float32, -bound, bound)
        return w, b

    w1, b1 = lin(ks[0], in1, hidden2)
    w2, b2 = lin(ks[1], hidden2, hidden1)
    w3, b3 = lin(ks[2], hidden1, out3)

    # BatchNorm params: gamma, beta, running_mean, running_var (non-trivial values)
    g1 = 1.0 + 0.1 * jax.random.normal(ks[3], (hidden2,), jnp.float32)
    be1 = 0.1 * jax.random.normal(ks[4], (hidden2,), jnp.float32)
    m1 = 0.05 * jax.random.normal(ks[5], (hidden2,), jnp.float32)
    v1 = jnp.abs(1.0 + 0.1 * jax.random.normal(ks[6], (hidden2,), jnp.float32))

    g2 = 1.0 + 0.1 * jax.random.normal(ks[7], (hidden1,), jnp.float32)
    be2 = jnp.zeros((hidden1,), jnp.float32)
    m2 = jnp.zeros((hidden1,), jnp.float32)
    v2 = jnp.ones((hidden1,), jnp.float32)

    return (w1, b1, g1, be1, m1, v1,
            w2, b2, g2, be2, m2, v2,
            w3, b3)


if __name__ == "__main__":
    # Small shapes consistent with the module's forward.
    batch = 8
    encoded_size = 10
    hidden_size1 = 32
    hidden_size2 = 64
    data_size = 13          # -> output dim = data_size - 1 = 12

    key = jax.random.PRNGKey(0)
    kz, kc, kp = jax.random.split(key, 3)
    z = jax.random.normal(kz, (batch, encoded_size), jnp.float32)
    c = jax.random.bernoulli(kc, 0.5, (batch, 1)).astype(jnp.float32)

    params = _init_params(kp, encoded_size, hidden_size2, hidden_size1, data_size)

    # One-time parameter prep (folded BN + bias, split w1) -- steady-state
    # forward is then a single pallas_call with 9 resident refs.
    folded = prepare_params(params, encoded_size)
    folded = jax.tree_util.tree_map(jax.block_until_ready, folded)

    out = nn_decoder_forward(z, c, folded)
    out = jax.block_until_ready(out)

    ref = _reference_forward(z, c, params)
    assert out.shape == (batch, data_size - 1)
    assert jnp.allclose(out, ref, atol=1e-5, rtol=1e-5), \
        f"max abs err {jnp.max(jnp.abs(out - ref))}"

    print("KERNEL_OK")
</pallas_src>

<mosaic_0001>
module attributes {stable_mosaic.version = 11 : i64} {
  func.func @_decoder_kernel(%arg0: i32, %arg1: memref<8x10xf32, #tpu.memory_space<vmem>>, %arg2: memref<8x1xf32, #tpu.memory_space<vmem>>, %arg3: memref<10x64xf32, #tpu.memory_space<vmem>>, %arg4: memref<1x64xf32, #tpu.memory_space<vmem>>, %arg5: memref<1x64xf32, #tpu.memory_space<vmem>>, %arg6: memref<64x32xf32, #tpu.memory_space<vmem>>, %arg7: memref<1x32xf32, #tpu.memory_space<vmem>>, %arg8: memref<32x12xf32, #tpu.memory_space<vmem>>, %arg9: memref<1x12xf32, #tpu.memory_space<vmem>>, %arg10: memref<8x12xf32, #tpu.memory_space<vmem>>) attributes {dimension_semantics = [#tpu.dimension_semantics<parallel>], iteration_bounds = array<i64: 1>, scalar_prefetch = 0 : i64, scratch_operands = 0 : i64, tpu.core_type = #tpu.core_type<tc>, window_params = [{transform_indices = @transform_0, window_bounds = array<i64: 8, 10>}, {transform_indices = @transform_1, window_bounds = array<i64: 8, 1>}, {pipeline_mode = #tpu.pipeline_mode<synchronous>, transform_indices = @transform_2, window_bounds = array<i64: 10, 64>}, {pipeline_mode = #tpu.pipeline_mode<synchronous>, transform_indices = @transform_3, window_bounds = array<i64: 1, 64>}, {pipeline_mode = #tpu.pipeline_mode<synchronous>, transform_indices = @transform_4, window_bounds = array<i64: 1, 64>}, {pipeline_mode = #tpu.pipeline_mode<synchronous>, transform_indices = @transform_5, window_bounds = array<i64: 64, 32>}, {pipeline_mode = #tpu.pipeline_mode<synchronous>, transform_indices = @transform_6, window_bounds = array<i64: 1, 32>}, {pipeline_mode = #tpu.pipeline_mode<synchronous>, transform_indices = @transform_7, window_bounds = array<i64: 32, 12>}, {pipeline_mode = #tpu.pipeline_mode<synchronous>, transform_indices = @transform_8, window_bounds = array<i64: 1, 12>}, {transform_indices = @transform_9, window_bounds = array<i64: 8, 12>}]} {
    %c0 = arith.constant 0 : index
    %c0_0 = arith.constant 0 : index
    %0 = vector.load %arg1[%c0, %c0_0] : memref<8x10xf32, #tpu.memory_space<vmem>>, vector<8x10xf32>
    %c0_1 = arith.constant 0 : index
    %c0_2 = arith.constant 0 : index
    %1 = vector.load %arg2[%c0_1, %c0_2] : memref<8x1xf32, #tpu.memory_space<vmem>>, vector<8x1xf32>
    %c0_3 = arith.constant 0 : index
    %c0_4 = arith.constant 0 : index
    %2 = vector.load %arg3[%c0_3, %c0_4] : memref<10x64xf32, #tpu.memory_space<vmem>>, vector<10x64xf32>
    %cst = arith.constant dense<0.000000e+00> : vector<8x64xf32>
    %3 = tpu.matmul %0, %2, %cst {dimension_numbers = #tpu.dot_dimension_numbers<[1], [0], [0], [1], [0, 0, 1, 1], [], []>} : vector<8x10xf32>, vector<10x64xf32>, vector<8x64xf32> -> vector<8x64xf32>
    %c0_5 = arith.constant 0 : index
    %c0_6 = arith.constant 0 : index
    %4 = vector.load %arg4[%c0_5, %c0_6] : memref<1x64xf32, #tpu.memory_space<vmem>>, vector<1x64xf32>
    %5 = vector.broadcast %1 : vector<8x1xf32> to vector<8x64xf32>
    %6 = vector.broadcast %4 : vector<1x64xf32> to vector<8x64xf32>
    %7 = arith.mulf %5, %6 : vector<8x64xf32>
    %8 = arith.addf %3, %7 : vector<8x64xf32>
    %c0_7 = arith.constant 0 : index
    %c0_8 = arith.constant 0 : index
    %9 = vector.load %arg5[%c0_7, %c0_8] : memref<1x64xf32, #tpu.memory_space<vmem>>, vector<1x64xf32>
    %10 = vector.broadcast %9 : vector<1x64xf32> to vector<8x64xf32>
    %11 = arith.addf %8, %10 : vector<8x64xf32>
    %cst_9 = arith.constant 0.000000e+00 : f32
    %12 = vector.broadcast %cst_9 : f32 to vector<8x64xf32>
    %13 = arith.maximumf %11, %12 : vector<8x64xf32>
    %c0_10 = arith.constant 0 : index
    %c0_11 = arith.constant 0 : index
    %14 = vector.load %arg6[%c0_10, %c0_11] : memref<64x32xf32, #tpu.memory_space<vmem>>, vector<64x32xf32>
    %cst_12 = arith.constant dense<0.000000e+00> : vector<8x32xf32>
    %15 = tpu.matmul %13, %14, %cst_12 {dimension_numbers = #tpu.dot_dimension_numbers<[1], [0], [0], [1], [0, 0, 1, 1], [], []>} : vector<8x64xf32>, vector<64x32xf32>, vector<8x32xf32> -> vector<8x32xf32>
    %c0_13 = arith.constant 0 : index
    %c0_14 = arith.constant 0 : index
    %16 = vector.load %arg7[%c0_13, %c0_14] : memref<1x32xf32, #tpu.memory_space<vmem>>, vector<1x32xf32>
    %17 = vector.broadcast %16 : vector<1x32xf32> to vector<8x32xf32>
    %18 = arith.addf %15, %17 : vector<8x32xf32>
    %cst_15 = arith.constant 0.000000e+00 : f32
    %19 = vector.broadcast %cst_15 : f32 to vector<8x32xf32>
    %20 = arith.maximumf %18, %19 : vector<8x32xf32>
    %c0_16 = arith.constant 0 : index
    %c0_17 = arith.constant 0 : index
    %21 = vector.load %arg8[%c0_16, %c0_17] : memref<32x12xf32, #tpu.memory_space<vmem>>, vector<32x12xf32>
    %cst_18 = arith.constant dense<0.000000e+00> : vector<8x12xf32>
    %22 = tpu.matmul %20, %21, %cst_18 {dimension_numbers = #tpu.dot_dimension_numbers<[1], [0], [0], [1], [0, 0, 1, 1], [], []>} : vector<8x32xf32>, vector<32x12xf32>, vector<8x12xf32> -> vector<8x12xf32>
    %c0_19 = arith.constant 0 : index
    %c0_20 = arith.constant 0 : index
    %23 = vector.load %arg9[%c0_19, %c0_20] : memref<1x12xf32, #tpu.memory_space<vmem>>, vector<1x12xf32>
    %24 = vector.broadcast %23 : vector<1x12xf32> to vector<8x12xf32>
    %25 = arith.addf %22, %24 : vector<8x12xf32>
    %26 = arith.negf %25 : vector<8x12xf32>
    %27 = math.exp %26 : vector<8x12xf32>
    %cst_21 = arith.constant 1.000000e+00 : f32
    %28 = vector.broadcast %cst_21 : f32 to vector<8x12xf32>
    %29 = arith.addf %28, %27 : vector<8x12xf32>
    %30 = arith.divf %28, %29 : vector<8x12xf32>
    %c0_22 = arith.constant 0 : index
    %c0_23 = arith.constant 0 : index
    %31 = vector.load %arg10[%c0_22, %c0_23] : memref<8x12xf32, #tpu.memory_space<vmem>>, vector<8x12xf32>
    tpu.vector_store %arg10[%c0_22, %c0_23], %30 {strides = array<i32>} : memref<8x12xf32, #tpu.memory_space<vmem>>, vector<8x12xf32>,
    return
  }
  func.func @transform_0(%arg0: i32) -> (i32, i32) {
    %c0_i32 = arith.constant 0 : i32
    %c0_i32_0 = arith.constant 0 : i32
    return %arg0, %c0_i32 : i32, i32
  }
  func.func @transform_1(%arg0: i32) -> (i32, i32) {
    %c0_i32 = arith.constant 0 : i32
    %c0_i32_0 = arith.constant 0 : i32
    return %arg0, %c0_i32 : i32, i32
  }
  func.func @transform_2(%arg0: i32) -> (i32, i32) {
    %c0_i32 = arith.constant 0 : i32
    %c0_i32_0 = arith.constant 0 : i32
    %c0_i32_1 = arith.constant 0 : i32
    return %c0_i32, %c0_i32_0 : i32, i32
  }
  func.func @transform_3(%arg0: i32) -> (i32, i32) {
    %c0_i32 = arith.constant 0 : i32
    %c0_i32_0 = arith.constant 0 : i32
    %c0_i32_1 = arith.constant 0 : i32
    return %c0_i32, %c0_i32_0 : i32, i32
  }
  func.func @transform_4(%arg0: i32) -> (i32, i32) {
    %c0_i32 = arith.constant 0 : i32
    %c0_i32_0 = arith.constant 0 : i32
    %c0_i32_1 = arith.constant 0 : i32
    return %c0_i32, %c0_i32_0 : i32, i32
  }
  func.func @transform_5(%arg0: i32) -> (i32, i32) {
    %c0_i32 = arith.constant 0 : i32
    %c0_i32_0 = arith.constant 0 : i32
    %c0_i32_1 = arith.constant 0 : i32
    return %c0_i32, %c0_i32_0 : i32, i32
  }
  func.func @transform_6(%arg0: i32) -> (i32, i32) {
    %c0_i32 = arith.constant 0 : i32
    %c0_i32_0 = arith.constant 0 : i32
    %c0_i32_1 = arith.constant 0 : i32
    return %c0_i32, %c0_i32_0 : i32, i32
  }
  func.func @transform_7(%arg0: i32) -> (i32, i32) {
    %c0_i32 = arith.constant 0 : i32
    %c0_i32_0 = arith.constant 0 : i32
    %c0_i32_1 = arith.constant 0 : i32
    return %c0_i32, %c0_i32_0 : i32, i32
  }
  func.func @transform_8(%arg0: i32) -> (i32, i32) {
    %c0_i32 = arith.constant 0 : i32
    %c0_i32_0 = arith.constant 0 : i32
    %c0_i32_1 = arith.constant 0 : i32
    return %c0_i32, %c0_i32_0 : i32, i32
  }
  func.func @transform_9(%arg0: i32) -> (i32, i32) {
    %c0_i32 = arith.constant 0 : i32
    %c0_i32_0 = arith.constant 0 : i32
    return %arg0, %c0_i32 : i32, i32
  }
}

</mosaic_0001>

<llo_original>
// kernel: tpu_custom_call.1
$region0: #{tpu_custom_call.1}
  #allocation0 [shape = 'u32[]', space=smem, size = 0x4, offset = 0x4, fixed_abs, tag = 'smem constant byte address 0x4 - core index']
  #allocation1 [shape = 'u32[144,128]{1,0:T(1,128)}', space=vmem, size = 0x12000, scoped, tag = 'internal scratch']
  %s0 = inlined_call_operand.vmem [shape: f32[8,10], index: 0, kind: input, shape index: {}]
  %s1 = inlined_call_operand.vmem [shape: f32[8,1], index: 1, kind: input, shape index: {}]
  %s2 = inlined_call_operand.vmem [shape: f32[10,64], index: 2, kind: input, shape index: {}]
  %s3 = inlined_call_operand.vmem [shape: f32[1,64], index: 3, kind: input, shape index: {}]
  %s4 = inlined_call_operand.vmem [shape: f32[1,64], index: 4, kind: input, shape index: {}]
  %s5 = inlined_call_operand.vmem [shape: f32[64,32], index: 5, kind: input, shape index: {}]
  %s6 = inlined_call_operand.vmem [shape: f32[1,32], index: 6, kind: input, shape index: {}]
  %s7 = inlined_call_operand.vmem [shape: f32[32,12], index: 7, kind: input, shape index: {}]
  %s8 = inlined_call_operand.vmem [shape: f32[1,12], index: 8, kind: input, shape index: {}]
  %s9 = inlined_call_operand.hbm [shape: f32[8,12], index: 9, kind: output, shape index: {}]
  %s10 = sld [smem:[#allocation0]]
  $region46: #{tpu_custom_call.1} parent=0
    _
  %s12 = ssub.s32 1, %s10
  %s13 = scalar_select 0, %s12, %s10
  $region1: #{tpu_custom_call.1} parent=0
    #allocation2 [shape = 'u8[4096]{0}', space=vmem, size = 0x1000, scoped, tag = 'output window, operand 0, single buffered']
    #allocation3 [shape = 's32[1]{0}', space=sflag, size = 0x4, scoped, tag = 'scoped memory for tpu_custom_call.1']
    %14 = vsyncpa [#allocation3], 0
    // Predicated region
    $region2: #{tpu_custom_call.1} parent=1 // pred_check
      _
    $region3: #{tpu_custom_call.1} parent=1 // pred_check_branch
      %16 = sbr.rel (0) target = $region5
    $region4: #{tpu_custom_call.1} parent=1 // pred_region
      _
    $region5: #{tpu_custom_call.1} parent=1 // pred_fallthru
      _
    // Predicated region
    $region6: #{tpu_custom_call.1} parent=1 // pred_check
      _
    $region7: #{tpu_custom_call.1} parent=1 // pred_check_branch
      %18 = sbr.rel (0) target = $region9
    $region8: #{tpu_custom_call.1} parent=1 // pred_region
      _
    $region9: #{tpu_custom_call.1} parent=1 // pred_fallthru
      _
    // Predicated region
    $region10: #{tpu_custom_call.1} parent=1 // pred_check
      _
    $region11: #{tpu_custom_call.1} parent=1 // pred_check_branch
      %20 = sbr.rel (0) target = $region13
    $region12: #{tpu_custom_call.1} parent=1 // pred_region
      _
    $region13: #{tpu_custom_call.1} parent=1 // pred_fallthru
      _
    // Predicated region
    $region14: #{tpu_custom_call.1} parent=1 // pred_check
      _
    $region15: #{tpu_custom_call.1} parent=1 // pred_check_branch
      %22 = sbr.rel (0) target = $region17
    $region16: #{tpu_custom_call.1} parent=1 // pred_region
      _
    $region17: #{tpu_custom_call.1} parent=1 // pred_fallthru
      _
    // Predicated region
    $region18: #{tpu_custom_call.1} parent=1 // pred_check
      _
    $region19: #{tpu_custom_call.1} parent=1 // pred_check_branch
      %24 = sbr.rel (0) target = $region21
    $region20: #{tpu_custom_call.1} parent=1 // pred_region
      _
    $region21: #{tpu_custom_call.1} parent=1 // pred_fallthru
      _
    // Predicated region
    $region22: #{tpu_custom_call.1} parent=1 // pred_check
      _
    $region23: #{tpu_custom_call.1} parent=1 // pred_check_branch
      %26 = sbr.rel (0) target = $region25
    $region24: #{tpu_custom_call.1} parent=1 // pred_region
      _
    $region25: #{tpu_custom_call.1} parent=1 // pred_fallthru
      _
    // Predicated region
    $region26: #{tpu_custom_call.1} parent=1 // pred_check
      _
    $region27: #{tpu_custom_call.1} parent=1 // pred_check_branch
      %28 = sbr.rel (0) target = $region29
    $region28: #{tpu_custom_call.1} parent=1 // pred_region
      _
    $region29: #{tpu_custom_call.1} parent=1 // pred_fallthru
      _
    // Predicated region
    $region30: #{tpu_custom_call.1} parent=1 // pred_check
      _
    $region31: #{tpu_custom_call.1} parent=1 // pred_check_branch
      %30 = sbr.rel (0) target = $region33
    $region32: #{tpu_custom_call.1} parent=1 // pred_region
      _
    $region33: #{tpu_custom_call.1} parent=1 // pred_fallthru
      _
    // Predicated region
    $region34: #{tpu_custom_call.1} parent=1 // pred_check
      _
    $region35: #{tpu_custom_call.1} parent=1 // pred_check_branch
      %32 = sbr.rel (0) target = $region37
    $region36: #{tpu_custom_call.1} parent=1 // pred_region
      _
    $region37: #{tpu_custom_call.1} parent=1 // pred_fallthru
      _
    %v33 = vld [vmem:[%s0] sm:$0xff]
    %v34 = vld [vmem:[%s1] sm:$0xff]
    %v35 = vld [vmem:[%s2] sm:$0xff]
    %v36 = vld [vmem:[%s2 + $0x8] sm:$0x3]
    %v37 = vld [vmem:[%s3] sm:$0x1]
    %39 = vset.pattern.permute.xlu0 0
    %40 = vperm.xlu0 %39, %v34
    %v41 = vpop.permute.xlu0 %40
    %v44 = vlaneseq
    %v45 = vshrl.u32 %v44, 7
    %v46 = vsub.s32 0, %v45
    %v47 = vrot.slane %v37, %v46
    %v49 = vmul.f32 %v41, %v47
    %vm50 = vcmask 80896
    %v52 = vsel %vm50, %v33, 0
    %vm54 = vcmask 1041408
    %v56 = vsel %vm54, %v36, 0
    %58 = vmatprep.subr.mxu0 0.0
    %59 = vmatpush1.msra.mxu0 %v35
    %60 = vmatprep.subr.mxu0 0.0
    %61 = vmatpush1.msra.mxu0 %v56
    %62 = vmatprep.subr.mxu0 0.0
    %63 = vmatpush1.msra.mxu0 0.0
    %64 = vmatprep.subr.mxu0 0.0
    %65 = vmatpush1.msra.mxu0 0.0
    %66 = vmatprep.subr.mxu0 0.0
    %67 = vmatpush1.msra.mxu0 0.0
    %68 = vmatprep.subr.mxu0 0.0
    %69 = vmatpush1.msra.mxu0 0.0
    %70 = vmatprep.subr.mxu0 0.0
    %71 = vmatpush1.msra.mxu0 0.0
    %72 = vmatprep.subr.mxu0 0.0
    %73 = vmatpush1.msra.mxu0 0.0
    %74 = vmatprep.subr.mxu0 0.0
    %75 = vmatpush1.msra.mxu0 0.0
    %76 = vmatprep.subr.mxu0 0.0
    %77 = vmatpush1.msra.mxu0 0.0
    %78 = vmatprep.subr.mxu0 0.0
    %79 = vmatpush1.msra.mxu0 0.0
    %80 = vmatprep.subr.mxu0 0.0
    %81 = vmatpush1.msra.mxu0 0.0
    %82 = vmatprep.subr.mxu0 0.0
    %83 = vmatpush1.msra.mxu0 0.0
    %84 = vmatprep.subr.mxu0 0.0
    %85 = vmatpush1.msra.mxu0 0.0
    %86 = vmatprep.subr.mxu0 0.0
    %87 = vmatpush1.msra.mxu0 0.0
    %88 = vmatprep.subr.mxu0 0.0
    %89 = vmatpush1.msra.mxu0 0.0
    %90 = vmatprep.subr.mxu0 0.0
    %91 = vmatpush1.msra.mxu0 0.0
    %92 = vmatprep.subr.mxu0 0.0
    %93 = vmatpush1.msra.mxu0 0.0
    %94 = vmatprep.subr.mxu0 0.0
    %95 = vmatpush1.msra.mxu0 0.0
    %96 = vmatprep.subr.mxu0 0.0
    %97 = vmatpush1.msra.mxu0 0.0
    %98 = vmatprep.subr.mxu0 0.0
    %99 = vmatpush1.msra.mxu0 0.0
    %100 = vmatprep.subr.mxu0 0.0
    %101 = vmatpush1.msra.mxu0 0.0
    %102 = vmatprep.subr.mxu0 0.0
    %103 = vmatpush1.msra.mxu0 0.0
    %104 = vmatprep.subr.mxu0 0.0
    %105 = vmatpush1.msra.mxu0 0.0
    %106 = vmatprep.subr.mxu0 0.0
    %107 = vmatpush1.msra.mxu0 0.0
    %108 = vmatprep.subr.mxu0 0.0
    %109 = vmatpush1.msra.mxu0 0.0
    %110 = vmatprep.subr.mxu0 0.0
    %111 = vmatpush1.msra.mxu0 0.0
    %112 = vmatprep.subr.mxu0 0.0
    %113 = vmatpush1.msra.mxu0 0.0
    %114 = vmatprep.subr.mxu0 0.0
    %115 = vmatpush1.msra.mxu0 0.0
    %116 = vmatprep.subr.mxu0 0.0
    %117 = vmatpush1.msra.mxu0 0.0
    %118 = vmatprep.subr.mxu0 0.0
    %119 = vmatpush1.msra.mxu0 0.0
    %120 = vmatprep.subr.mxu0 0.0
    %121 = vmatpush1.msra.mxu0 0.0
    %122 = vmatprep.mubr.f32.mxu0 0.0
    %123 = vmatmul.mubr.f32.gmra.mrb[0].mxu0 %v52
    %v124 = vpop.f32.mrb[0].mxu0
    %v125 = vadd.f32 %v49, %v124
    %v126 = vpop.f32.mrb[0].mxu0
    %127 = vdwg.mxu0
    %v128 = vld [vmem:[%s4] sm:$0x1]
    %v130 = vlaneseq
    %v131 = vshrl.u32 %v130, 7
    %v132 = vsub.s32 0, %v131
    %v133 = vrot.slane %v128, %v132
    %v135 = vadd.f32 %v125, %v133
    %v136 = vmax.f32 %v135, 0.0
    %v137 = vld [vmem:[%s5] sm:$0xff]
    %v138 = vld [vmem:[%s5 + $0x8] sm:$0xff]
    %v139 = vld [vmem:[%s5 + $0x10] sm:$0xff]
    %v140 = vld [vmem:[%s5 + $0x18] sm:$0xff]
    %v141 = vld [vmem:[%s5 + $0x20] sm:$0xff]
    %v142 = vld [vmem:[%s5 + $0x28] sm:$0xff]
    %v143 = vld [vmem:[%s5 + $0x30] sm:$0xff]
    %v144 = vld [vmem:[%s5 + $0x38] sm:$0xff]
    %v145 = vld [vmem:[%s6] sm:$0x1]
    %v147 = vlaneseq
    %v148 = vshrl.u32 %v147, 7
    %v149 = vsub.s32 0, %v148
    %v150 = vrot.slane %v145, %v149
    %vm152 = vcmask 523264
    %v154 = vsel %vm152, %v136, 0
    %156 = vmatprep.subr.mxu0 0.0
    %157 = vmatpush1.msra.mxu0 %v137
    %158 = vmatprep.subr.mxu0 0.0
    %159 = vmatpush1.msra.mxu0 %v138
    %160 = vmatprep.subr.mxu0 0.0
    %161 = vmatpush1.msra.mxu0 %v139
    %162 = vmatprep.subr.mxu0 0.0
    %163 = vmatpush1.msra.mxu0 %v140
    %164 = vmatprep.subr.mxu0 0.0
    %165 = vmatpush1.msra.mxu0 %v141
    %166 = vmatprep.subr.mxu0 0.0
    %167 = vmatpush1.msra.mxu0 %v142
    %168 = vmatprep.subr.mxu0 0.0
    %169 = vmatpush1.msra.mxu0 %v143
    %170 = vmatprep.subr.mxu0 0.0
    %171 = vmatpush1.msra.mxu0 %v144
    %172 = vmatprep.subr.mxu0 0.0
    %173 = vmatpush1.msra.mxu0 0.0
    %174 = vmatprep.subr.mxu0 0.0
    %175 = vmatpush1.msra.mxu0 0.0
    %176 = vmatprep.subr.mxu0 0.0
    %177 = vmatpush1.msra.mxu0 0.0
    %178 = vmatprep.subr.mxu0 0.0
    %179 = vmatpush1.msra.mxu0 0.0
    %180 = vmatprep.subr.mxu0 0.0
    %181 = vmatpush1.msra.mxu0 0.0
    %182 = vmatprep.subr.mxu0 0.0
    %183 = vmatpush1.msra.mxu0 0.0
    %184 = vmatprep.subr.mxu0 0.0
    %185 = vmatpush1.msra.mxu0 0.0
    %186 = vmatprep.subr.mxu0 0.0
    %187 = vmatpush1.msra.mxu0 0.0
    %188 = vmatprep.subr.mxu0 0.0
    %189 = vmatpush1.msra.mxu0 0.0
    %190 = vmatprep.subr.mxu0 0.0
    %191 = vmatpush1.msra.mxu0 0.0
    %192 = vmatprep.subr.mxu0 0.0
    %193 = vmatpush1.msra.mxu0 0.0
    %194 = vmatprep.subr.mxu0 0.0
    %195 = vmatpush1.msra.mxu0 0.0
    %196 = vmatprep.subr.mxu0 0.0
    %197 = vmatpush1.msra.mxu0 0.0
    %198 = vmatprep.subr.mxu0 0.0
    %199 = vmatpush1.msra.mxu0 0.0
    %200 = vmatprep.subr.mxu0 0.0
    %201 = vmatpush1.msra.mxu0 0.0
    %202 = vmatprep.subr.mxu0 0.0
    %203 = vmatpush1.msra.mxu0 0.0
    %204 = vmatprep.subr.mxu0 0.0
    %205 = vmatpush1.msra.mxu0 0.0
    %206 = vmatprep.subr.mxu0 0.0
    %207 = vmatpush1.msra.mxu0 0.0
    %208 = vmatprep.subr.mxu0 0.0
    %209 = vmatpush1.msra.mxu0 0.0
    %210 = vmatprep.subr.mxu0 0.0
    %211 = vmatpush1.msra.mxu0 0.0
    %212 = vmatprep.subr.mxu0 0.0
    %213 = vmatpush1.msra.mxu0 0.0
    %214 = vmatprep.subr.mxu0 0.0
    %215 = vmatpush1.msra.mxu0 0.0
    %216 = vmatprep.subr.mxu0 0.0
    %217 = vmatpush1.msra.mxu0 0.0
    %218 = vmatprep.subr.mxu0 0.0
    %219 = vmatpush1.msra.mxu0 0.0
    %220 = vmatprep.mubr.f32.mxu0 0.0
    %221 = vmatmul.mubr.f32.gmra.mrb[0].mxu0 %v154
    %v222 = vpop.f32.mrb[0].mxu0
    %v223 = vadd.f32 %v150, %v222
    %v224 = vpop.f32.mrb[0].mxu0
    %225 = vdwg.mxu0
    %v226 = vmax.f32 %v223, 0.0
    %v227 = vld [vmem:[%s7] sm:$0xff]
    %v228 = vld [vmem:[%s7 + $0x8] sm:$0xff]
    %v229 = vld [vmem:[%s7 + $0x10] sm:$0xff]
    %v230 = vld [vmem:[%s7 + $0x18] sm:$0xff]
    %v231 = vld [vmem:[%s8] sm:$0x1]
    %v233 = vlaneseq
    %v234 = vshrl.u32 %v233, 7
    %v235 = vsub.s32 0, %v234
    %v236 = vrot.slane %v231, %v235
    %vm238 = vcmask 261120
    %v240 = vsel %vm238, %v226, 0
    %242 = vmatprep.subr.mxu0 0.0
    %243 = vmatpush1.msra.mxu0 %v227
    %244 = vmatprep.subr.mxu0 0.0
    %245 = vmatpush1.msra.mxu0 %v228
    %246 = vmatprep.subr.mxu0 0.0
    %247 = vmatpush1.msra.mxu0 %v229
    %248 = vmatprep.subr.mxu0 0.0
    %249 = vmatpush1.msra.mxu0 %v230
    %250 = vmatprep.subr.mxu0 0.0
    %251 = vmatpush1.msra.mxu0 0.0
    %252 = vmatprep.subr.mxu0 0.0
    %253 = vmatpush1.msra.mxu0 0.0
    %254 = vmatprep.subr.mxu0 0.0
    %255 = vmatpush1.msra.mxu0 0.0
    %256 = vmatprep.subr.mxu0 0.0
    %257 = vmatpush1.msra.mxu0 0.0
    %258 = vmatprep.subr.mxu0 0.0
    %259 = vmatpush1.msra.mxu0 0.0
    %260 = vmatprep.subr.mxu0 0.0
    %261 = vmatpush1.msra.mxu0 0.0
    %262 = vmatprep.subr.mxu0 0.0
    %263 = vmatpush1.msra.mxu0 0.0
    %264 = vmatprep.subr.mxu0 0.0
    %265 = vmatpush1.msra.mxu0 0.0
    %266 = vmatprep.subr.mxu0 0.0
    %267 = vmatpush1.msra.mxu0 0.0
    %268 = vmatprep.subr.mxu0 0.0
    %269 = vmatpush1.msra.mxu0 0.0
    %270 = vmatprep.subr.mxu0 0.0
    %271 = vmatpush1.msra.mxu0 0.0
    %272 = vmatprep.subr.mxu0 0.0
    %273 = vmatpush1.msra.mxu0 0.0
    %274 = vmatprep.subr.mxu0 0.0
    %275 = vmatpush1.msra.mxu0 0.0
    %276 = vmatprep.subr.mxu0 0.0
    %277 = vmatpush1.msra.mxu0 0.0
    %278 = vmatprep.subr.mxu0 0.0
    %279 = vmatpush1.msra.mxu0 0.0
    %280 = vmatprep.subr.mxu0 0.0
    %281 = vmatpush1.msra.mxu0 0.0
    %282 = vmatprep.subr.mxu0 0.0
    %283 = vmatpush1.msra.mxu0 0.0
    %284 = vmatprep.subr.mxu0 0.0
    %285 = vmatpush1.msra.mxu0 0.0
    %286 = vmatprep.subr.mxu0 0.0
    %287 = vmatpush1.msra.mxu0 0.0
    %288 = vmatprep.subr.mxu0 0.0
    %289 = vmatpush1.msra.mxu0 0.0
    %290 = vmatprep.subr.mxu0 0.0
    %291 = vmatpush1.msra.mxu0 0.0
    %292 = vmatprep.subr.mxu0 0.0
    %293 = vmatpush1.msra.mxu0 0.0
    %294 = vmatprep.subr.mxu0 0.0
    %295 = vmatpush1.msra.mxu0 0.0
    %296 = vmatprep.subr.mxu0 0.0
    %297 = vmatpush1.msra.mxu0 0.0
    %298 = vmatprep.subr.mxu0 0.0
    %299 = vmatpush1.msra.mxu0 0.0
    %300 = vmatprep.subr.mxu0 0.0
    %301 = vmatpush1.msra.mxu0 0.0
    %302 = vmatprep.subr.mxu0 0.0
    %303 = vmatpush1.msra.mxu0 0.0
    %304 = vmatprep.subr.mxu0 0.0
    %305 = vmatpush1.msra.mxu0 0.0
    %306 = vmatprep.mubr.f32.mxu0 0.0
    %307 = vmatmul.mubr.f32.gmra.mrb[0].mxu0 %v240
    %v308 = vpop.f32.mrb[0].mxu0
    %v309 = vadd.f32 %v236, %v308
    %v310 = vpop.f32.mrb[0].mxu0
    %311 = vdwg.mxu0
    %v312 = vxor.u32 %v309, 2147483648
    %v313 = vmul.f32 %v312, 1.442695
    %v314 = vpow.pop %v313
    %v315 = vadd.f32 %v314, 1.0
    %v316 = vrcp.pop %v315
    %v317 = vmul.f32 1.0, %v316
    %vm318 = vcmask 97280
    %319 = vst.msk [vmem:[#allocation2] sm:$0xff] %vm318, %v317
    // Predicated region
    $region38: #{tpu_custom_call.1} parent=1 // pred_check
      _
    $region39: #{tpu_custom_call.1} parent=1 // pred_check_branch
      %321 = sbr.rel (0) target = $region41
    $region40: #{tpu_custom_call.1} parent=1 // pred_region
      %s323 = ssub.s32 128, 128
      %324 = vsyncadd [#allocation3], %s323
      %s326 = sshll.u32 [#allocation2], 4
      %s327 = int_to_ptr.vmem [resolvable:$true] %s326
      %329 = dma.vmem_to_hbm [thread:$0]  %s327, 128, %s9, [#allocation3]
    $region41: #{tpu_custom_call.1} parent=1 // pred_fallthru
      _
    // Predicated region
    $region42: #{tpu_custom_call.1} parent=1 // pred_check
      _
    $region43: #{tpu_custom_call.1} parent=1 // pred_check_branch
      %331 = sbr.rel (0) target = $region45
    $region44: #{tpu_custom_call.1} parent=1 // pred_region
      %332 = dma.done [#allocation3], 128
    $region45: #{tpu_custom_call.1} parent=1 // pred_fallthru
      _
    %333 = vsyncpa [#allocation3], 1

</llo_original>
